<compile_context>
chip_gen: v5e
topology: v5e:2x2
jax: 0.10.0
libtpu: 0.0.40
codegen_flags: <defaults>
</compile_context>

<pallas_src>
import jax
import jax.numpy as jnp
from jax.experimental import pallas as pl
from jax.experimental.pallas import tpu as pltpu


_LANE = 1024                  # lane-dense last dim (8 * 128) -> unmasked vst
_PALLAS_MIN_ELEMS = 1 << 18   # below ~256K elems, fused XLA beats kernel launch


def _select_tiling():
    """Generation-aware (tile_rows, vmem_limit_bytes).

    Conservative default fits v7x (64 MiB physical VMEM per TensorCore):
    TM=1024 f32 tile = 4 MiB, double-buffered in+out = 16 MiB <= 32 MiB scope.
    On v5e/v6e (128 MiB VMEM) go to TM=2048 with a 64 MiB scoped budget.
    """
    tm, vmem = 1024, 32 * 1024 * 1024
    try:
        cap = getattr(pltpu.get_tpu_info(), "vmem_capacity_bytes", 0)
        if cap >= 100 * 1024 * 1024:          # v5e / v6e class parts
            tm, vmem = 2048, 64 * 1024 * 1024
    except Exception:
        pass                                  # keep the v7x-safe defaults
    return tm, vmem


def _contrast_kernel(rate_ref, x_ref, o_ref):
    # rate_ref: (1,) f32 scalar-prefetch ref in SMEM.
    # x_ref / o_ref: (tm, _LANE) tile in VMEM.
    x = x_ref[...]
    rate = rate_ref[0]
    if x.dtype in (jnp.dtype(jnp.float32), jnp.dtype(jnp.bfloat16)):
        # v6e/v7x have native bf16 VALU; computing in-dtype avoids doubling
        # vreg pressure at large tiles.  (On v5e Mosaic expands bf16 per-op.)
        compute_dtype = x.dtype
    else:
        compute_dtype = jnp.float32
    y = jnp.clip(x.astype(compute_dtype) * rate.astype(compute_dtype), 0.0, 1.0)
    # TODO(synk): integer image dtypes would truncate here; kornia operates on
    # float images in [0, 1], so float semantics are kept.
    o_ref[...] = y.astype(o_ref.dtype)


def adjust_contrast_pallas(image, rate):
    """kornia.enhance.adjust_contrast(image, rate) with clipping to [0, 1].

    Requires image.size % _LANE == 0 so that the lane-dense (m, 1024) view is
    a free bitcast (no pad / slice HBM passes).  The dispatcher below routes
    non-aligned shapes to the fused XLA expression instead.
    """
    orig_shape = image.shape
    orig_dtype = image.dtype
    total = image.size
    if total % _LANE != 0:
        raise ValueError(
            f"adjust_contrast_pallas requires size % {_LANE} == 0, got {total}"
        )

    m = total // _LANE
    x2 = image.reshape(m, _LANE)              # contiguous -> free bitcast

    tm_max, vmem_limit = _select_tiling()
    tm = tm_max if m >= tm_max else m         # full extent when small (valid block)
    grid = (pl.cdiv(m, tm),)                  # ragged final row-block is masked

    rate_arr = jnp.asarray(rate, jnp.float32).reshape(1)

    out2 = pl.pallas_call(
        _contrast_kernel,
        out_shape=jax.ShapeDtypeStruct((m, _LANE), orig_dtype),
        grid_spec=pltpu.PrefetchScalarGridSpec(
            num_scalar_prefetch=1,            # rate staged into SMEM before the grid
            grid=grid,
            in_specs=[pl.BlockSpec((tm, _LANE), lambda i, rate: (i, 0))],
            out_specs=pl.BlockSpec((tm, _LANE), lambda i, rate: (i, 0)),
        ),
        compiler_params=pltpu.CompilerParams(
            dimension_semantics=("parallel",),   # free; op is HBM-bound anyway
            vmem_limit_bytes=vmem_limit,
        ),
    )(rate_arr, x2)

    return out2.reshape(orig_shape)


def adjust_contrast(image, rate, *, force_pallas=False):
    """Dispatch: large lane-aligned tensors use Pallas; everything else uses
    the fused XLA expression (same HBM roofline, no custom-call boundary and
    no wrapper copies for non-aligned shapes)."""
    aligned = (image.size % _LANE) == 0
    if aligned and (force_pallas or image.size >= _PALLAS_MIN_ELEMS):
        return adjust_contrast_pallas(image, rate)
    return jnp.clip(image.astype(jnp.float32) * rate, 0.0, 1.0).astype(image.dtype)


class RandomContrast:
    """JAX/Pallas equivalent of the PyTorch RandomContrast noise layer."""

    def __init__(self, min_r, max_r, force_pallas=False):
        self.range = (min_r, max_r)
        self.force_pallas = force_pallas

    def forward(self, image_and_cover, key):
        image, cover_image = image_and_cover  # cover_image unused (as in torch)
        min_r, max_r = self.range
        # TODO(synk): torch draws the rate with host-side random.uniform; here
        # it comes from an explicit jax.random key, so exact RNG parity with
        # the PyTorch module is not expected.
        rate = jax.random.uniform(
            key, (), minval=min_r, maxval=max_r, dtype=jnp.float32
        )
        return adjust_contrast(image, rate, force_pallas=self.force_pallas)


if __name__ == "__main__":
    key = jax.random.PRNGKey(0)
    k_img, k_cov, k_rate, k_img2 = jax.random.split(key, 4)

    # Small NCHW inputs: batch=2, channels=4, spatial=16  (2048 elems, aligned).
    image = jax.random.uniform(k_img, (2, 4, 16, 16), dtype=jnp.float32)
    cover = jax.random.uniform(k_cov, (2, 4, 16, 16), dtype=jnp.float32)

    # Force the Pallas path so the kernel itself is exercised at demo size.
    layer = RandomContrast(0.5, 1.5, force_pallas=True)
    out = jax.block_until_ready(layer.forward((image, cover), k_rate))

    # Reference check against plain-JAX semantics of kornia.adjust_contrast.
    rate_ref = jax.random.uniform(
        k_rate, (), minval=0.5, maxval=1.5, dtype=jnp.float32
    )
    ref = jnp.clip(image * rate_ref, 0.0, 1.0)
    assert out.shape == image.shape and out.dtype == image.dtype
    assert jnp.allclose(out, ref, atol=1e-6), "mismatch vs reference (pallas)"

    # Direct Pallas call on another aligned shape (exercises tm = full-extent rows).
    image_b = jax.random.uniform(k_cov, (4, 3, 32, 32), dtype=jnp.float32)  # 12288 elems
    out_b = jax.block_until_ready(adjust_contrast_pallas(image_b, rate_ref))
    ref_b = jnp.clip(image_b * rate_ref, 0.0, 1.0)
    assert jnp.allclose(out_b, ref_b, atol=1e-6), "mismatch vs reference (pallas, aligned)"

    # Odd (non-lane-aligned) shape: dispatcher routes to fused XLA (no pad/slice copies).
    image2 = jax.random.uniform(k_img2, (1, 3, 17, 19), dtype=jnp.float32)
    out2 = jax.block_until_ready(adjust_contrast(image2, rate_ref))
    ref2 = jnp.clip(image2 * rate_ref, 0.0, 1.0)
    assert out2.shape == image2.shape and out2.dtype == image2.dtype
    assert jnp.allclose(out2, ref2, atol=1e-6), "mismatch vs reference (xla tail path)"

    print("KERNEL_OK")
</pallas_src>

<mosaic_0001>
module attributes {stable_mosaic.version = 11 : i64} {
  func.func @_contrast_kernel(%arg0: i32, %arg1: memref<1xf32, #tpu.memory_space<smem>>, %arg2: memref<2x1024xf32, #tpu.memory_space<vmem>>, %arg3: memref<2x1024xf32, #tpu.memory_space<vmem>>) attributes {dimension_semantics = [#tpu.dimension_semantics<parallel>], iteration_bounds = array<i64: 1>, scalar_prefetch = 1 : i64, scratch_operands = 0 : i64, tpu.core_type = #tpu.core_type<tc>, window_params = [{transform_indices = @transform_0, window_bounds = array<i64: 2, 1024>}, {transform_indices = @transform_1, window_bounds = array<i64: 2, 1024>}]} {
    %c0 = arith.constant 0 : index
    %c0_0 = arith.constant 0 : index
    %0 = vector.load %arg2[%c0, %c0_0] : memref<2x1024xf32, #tpu.memory_space<vmem>>, vector<2x1024xf32>
    %c0_1 = arith.constant 0 : index
    %1 = memref.load %arg1[%c0_1] : memref<1xf32, #tpu.memory_space<smem>>
    %2 = vector.broadcast %1 : f32 to vector<2x1024xf32>
    %3 = arith.mulf %0, %2 : vector<2x1024xf32>
    %cst = arith.constant 0.000000e+00 : f32
    %cst_2 = arith.constant 1.000000e+00 : f32
    %4 = vector.broadcast %cst : f32 to vector<2x1024xf32>
    %5 = arith.maximumf %4, %3 : vector<2x1024xf32>
    %6 = vector.broadcast %cst_2 : f32 to vector<2x1024xf32>
    %7 = arith.minimumf %6, %5 : vector<2x1024xf32>
    %c0_3 = arith.constant 0 : index
    %c0_4 = arith.constant 0 : index
    %8 = vector.load %arg3[%c0_3, %c0_4] : memref<2x1024xf32, #tpu.memory_space<vmem>>, vector<2x1024xf32>
    tpu.vector_store %arg3[%c0_3, %c0_4], %7 {strides = array<i32>} : memref<2x1024xf32, #tpu.memory_space<vmem>>, vector<2x1024xf32>,
    return
  }
  func.func @transform_0(%arg0: i32, %arg1: memref<1xf32, #tpu.memory_space<smem>>) -> (i32, i32) {
    %c0_i32 = arith.constant 0 : i32
    %c0_i32_0 = arith.constant 0 : i32
    return %arg0, %c0_i32 : i32, i32
  }
  func.func @transform_1(%arg0: i32, %arg1: memref<1xf32, #tpu.memory_space<smem>>) -> (i32, i32) {
    %c0_i32 = arith.constant 0 : i32
    %c0_i32_0 = arith.constant 0 : i32
    return %arg0, %c0_i32 : i32, i32
  }
}

</mosaic_0001>

<llo_original>
// kernel: tpu_custom_call.1
$region0: #{tpu_custom_call.1}
  #allocation0 [shape = 'u32[]', space=smem, size = 0x4, offset = 0x4, fixed_abs, tag = 'smem constant byte address 0x4 - core index']
  #allocation1 [shape = 'u32[72,128]{1,0:T(1,128)}', space=vmem, size = 0x9000, scoped, tag = 'internal scratch']
  #allocation2 [shape = 's32[1]{0}', space=sflag, size = 0x4, scoped, tag = 'scoped memory for tpu_custom_call.1']
  #allocation3 [shape = 'f32[1]{0:T(128)S(6)}', space=smem, size = 0x200, scoped, tag = 'prefetched SMEM operand 0']
  %s0 = inlined_call_operand.<no memory space> [shape: f32[1], index: 0, kind: input, shape index: {}]
  %s1 = inlined_call_operand.hbm [shape: f32[2,1024], index: 1, kind: input, shape index: {}]
  %s2 = inlined_call_operand.hbm [shape: f32[2,1024], index: 2, kind: output, shape index: {}]
  %s3 = sld [smem:[#allocation0]]
  $region18: #{tpu_custom_call.1} parent=0
    _
  %s5 = ssub.s32 1, %s3
  %s6 = scalar_select 0, %s5, %s3
  %7 = sst [smem:[#allocation3]] %s0
  $region1: #{tpu_custom_call.1} parent=0
    #allocation4 [shape = 'u8[8192]{0}', space=vmem, size = 0x2000, scoped, tag = 'input window, operand 1, single buffered']
    #allocation5 [shape = 's32[1]{0}', space=sflag, size = 0x4, scoped, tag = 'scoped memory for tpu_custom_call.1']
    #allocation6 [shape = 's32[1]{0}', space=sflag, size = 0x4, scoped, tag = 'scoped memory for tpu_custom_call.1']
    #allocation7 [shape = 'u8[8192]{0}', space=vmem, size = 0x2000, scoped, tag = 'output window, operand 0, single buffered']
    %8 = vsyncpa [#allocation5], 0
    %9 = vsyncpa [#allocation6], 0
    // Predicated region
    $region2: #{tpu_custom_call.1} parent=1 // pred_check
      _
    $region3: #{tpu_custom_call.1} parent=1 // pred_check_branch
      %11 = sbr.rel (0) target = $region5
    $region4: #{tpu_custom_call.1} parent=1 // pred_region
      %13 = vsyncadd [#allocation5], 0
      %s15 = sshll.u32 %s1, 4
      %s16 = int_to_ptr.hbm [resolvable:$true] %s15
      %s17 = sshll.u32 [#allocation4], 4
      %s18 = int_to_ptr.vmem [resolvable:$true] %s17
      %20 = dma.hbm_to_vmem [thread:$0]  %s16, 256, %s18, [#allocation5]
    $region5: #{tpu_custom_call.1} parent=1 // pred_fallthru
      _
    // Predicated region
    $region6: #{tpu_custom_call.1} parent=1 // pred_check
      _
    $region7: #{tpu_custom_call.1} parent=1 // pred_check_branch
      %22 = sbr.rel (0) target = $region9
    $region8: #{tpu_custom_call.1} parent=1 // pred_region
      %24 = dma.done [#allocation5], 256
    $region9: #{tpu_custom_call.1} parent=1 // pred_fallthru
      _
    %v25 = vld [vmem:[#allocation4] sm:$0xff]
    %v26 = vld [vmem:[#allocation4 + $0x8] sm:$0xff]
    %s27 = sld [smem:[#allocation3]]
    %v28 = vstv %s27
    %v29 = vmul.f32 %v25, %v28
    %v30 = vmul.f32 %v26, %v28
    %v31 = vmax.f32 %v29, 0.0
    %v32 = vmax.f32 %v30, 0.0
    %v33 = vmin.f32 %v31, 1.0
    %v34 = vmin.f32 %v32, 1.0
    %35 = vst [vmem:[#allocation7] sm:$0xff] %v33
    %36 = vst [vmem:[#allocation7 + $0x8] sm:$0xff] %v34
    // Predicated region
    $region10: #{tpu_custom_call.1} parent=1 // pred_check
      _
    $region11: #{tpu_custom_call.1} parent=1 // pred_check_branch
      %38 = sbr.rel (0) target = $region13
    $region12: #{tpu_custom_call.1} parent=1 // pred_region
      %40 = vsyncadd [#allocation6], 0
      %s42 = sshll.u32 [#allocation7], 4
      %s43 = int_to_ptr.vmem [resolvable:$true] %s42
      %s44 = sshll.u32 %s2, 4
      %s45 = int_to_ptr.hbm [resolvable:$true] %s44
      %47 = dma.vmem_to_hbm [thread:$0]  %s43, 256, %s45, [#allocation6]
    $region13: #{tpu_custom_call.1} parent=1 // pred_fallthru
      _
    // Predicated region
    $region14: #{tpu_custom_call.1} parent=1 // pred_check
      _
    $region15: #{tpu_custom_call.1} parent=1 // pred_check_branch
      %49 = sbr.rel (0) target = $region17
    $region16: #{tpu_custom_call.1} parent=1 // pred_region
      %51 = dma.done [#allocation6], 256
    $region17: #{tpu_custom_call.1} parent=1 // pred_fallthru
      _
    %52 = vsyncpa [#allocation5], 1
    %53 = vsyncpa [#allocation6], 1

</llo_original>
